<compile_context>
chip_gen: v6e
topology: v6e:2x2x1
jax: 0.10.0
libtpu: 0.0.40
codegen_flags: <defaults>
</compile_context>

<pallas_src>
import numpy as np
import jax
import jax.numpy as jnp
from jax.experimental import pallas as pl
from jax.experimental.pallas import tpu as pltpu


# ---------------------------------------------------------------------------
# Glue: fixed linear operators for adaptive avg-pool and bilinear upsample
# ---------------------------------------------------------------------------
def adaptive_pool_matrix(in_size: int, out_size: int) -> np.ndarray:
    """Row-stochastic (out_size, in_size) matrix reproducing AdaptiveAvgPool1d."""
    m = np.zeros((out_size, in_size), dtype=np.float32)
    for i in range(out_size):
        start = (i * in_size) // out_size
        end = -((-(i + 1) * in_size) // out_size)  # ceil((i+1)*in/out)
        m[i, start:end] = 1.0 / (end - start)
    return m


def bilinear_matrix(in_size: int, out_size: int) -> np.ndarray:
    """(out_size, in_size) matrix reproducing 1-D bilinear upsample,
    align_corners=False (PyTorch nn.Upsample default)."""
    m = np.zeros((out_size, in_size), dtype=np.float32)
    scale = in_size / out_size
    for o in range(out_size):
        src = (o + 0.5) * scale - 0.5
        src = max(src, 0.0)
        i0 = min(int(np.floor(src)), in_size - 1)
        i1 = min(i0 + 1, in_size - 1)
        l1 = src - i0
        m[o, i0] += 1.0 - l1
        m[o, i1] += l1
    return m


def _choose_hw_tile(hw: int, target: int = 1024) -> int:
    """Largest multiple of 128 that divides hw and is <= target (else hw)."""
    if hw <= target:
        return hw
    t = (target // 128) * 128
    while t >= 128:
        if hw % t == 0:
            return t
        t -= 128
    return hw


# ---------------------------------------------------------------------------
# Fused Pallas kernel: all pyramid levels, one batch element per outer step,
# HW as a tiled reduction axis with a VMEM accumulator for `pooled`.
# ---------------------------------------------------------------------------
def _make_kernel(compute_dtype):
    def kernel(x_ref, k_ref, w_ref, shift_ref, mask_ref, u_ref, o_ref, acc_ref):
        # x_ref:     (1, C_in, T_HW)   f32   (cast to compute_dtype in-kernel)
        # k_ref:     (T_HW, sumL2)     compute_dtype   concatenated pool operators
        # w_ref:     (nl*Cd, C_in)     compute_dtype   conv weights, BN scale folded
        # shift_ref: (nl*Cd, 1)        f32             fused BN shift
        # mask_ref:  (nl*Cd, sumL2)    f32             block-diagonal 0/1 mask
        # u_ref:     (sumL2, Ho*Wo)    compute_dtype   concatenated upsample operators
        # o_ref:     (1, nl*Cd, Ho*Wo) out_dtype
        # acc_ref:   (C_in, sumL2)     f32 VMEM scratch (pooled accumulator)
        k_step = pl.program_id(1)

        @pl.when(k_step == 0)
        def _init():
            acc_ref[...] = jnp.zeros_like(acc_ref)

        xb = x_ref[0].astype(compute_dtype)                      # per-tile cast, VPU
        acc_ref[...] += jnp.dot(xb, k_ref[...],
                                preferred_element_type=jnp.float32)

        @pl.when(k_step == pl.num_programs(1) - 1)
        def _finalize():
            pooled = acc_ref[...].astype(compute_dtype)          # (C_in, sumL2)
            conv = jnp.dot(w_ref[...], pooled,
                           preferred_element_type=jnp.float32)   # (nl*Cd, sumL2) f32
            # BN shift + ReLU; mask zeroes cross-level columns so the single
            # upsample matmul below is exactly the per-level upsample.
            y = jnp.maximum(conv + shift_ref[...], 0.0) * mask_ref[...]
            out = jnp.dot(y.astype(compute_dtype), u_ref[...],
                          preferred_element_type=jnp.float32)    # (nl*Cd, HoWo)
            o_ref[0] = out.astype(o_ref.dtype)                   # lane-dense store

    return kernel


def _build_forward(c_down, nl, l2sum, out_size, compute_dtype, out_dtype):
    ho, wo = out_size
    howo = ho * wo
    cd_total = nl * c_down
    kernel = _make_kernel(compute_dtype)
    single_buf = pl.Buffered(buffer_count=1)   # grid-invariant operands

    def forward(x, k_all, w_flat, shift_flat, mask, u_all):
        n, c_in, H, W = x.shape
        hw = H * W
        t_hw = _choose_hw_tile(hw)
        n_k = hw // t_hw
        x_flat = x.reshape(n, c_in, hw)          # no dtype convert in the wrapper
        out = pl.pallas_call(
            kernel,
            out_shape=jax.ShapeDtypeStruct((n, cd_total, howo), out_dtype),
            grid=(n, n_k),
            in_specs=[
                pl.BlockSpec((1, c_in, t_hw), lambda b, k: (b, 0, k)),
                pl.BlockSpec((t_hw, l2sum), lambda b, k: (k, 0)),
                pl.BlockSpec((cd_total, c_in), lambda b, k: (0, 0),
                             pipeline_mode=single_buf),
                pl.BlockSpec((cd_total, 1), lambda b, k: (0, 0),
                             pipeline_mode=single_buf),
                pl.BlockSpec((cd_total, l2sum), lambda b, k: (0, 0),
                             pipeline_mode=single_buf),
                pl.BlockSpec((l2sum, howo), lambda b, k: (0, 0),
                             pipeline_mode=single_buf),
            ],
            out_specs=pl.BlockSpec((1, cd_total, howo), lambda b, k: (b, 0, 0)),
            scratch_shapes=[pltpu.VMEM((c_in, l2sum), jnp.float32)],
            compiler_params=pltpu.CompilerParams(
                dimension_semantics=("parallel", "arbitrary"),
                vmem_limit_bytes=64 * 1024 * 1024),
        )(x_flat, k_all, w_flat, shift_flat, mask, u_all)
        return out.reshape(n, cd_total, ho, wo)

    return jax.jit(forward)


# ---------------------------------------------------------------------------
# Module wrapper
# ---------------------------------------------------------------------------
class PyramidPoolingModulePallas:
    def __init__(self, in_channels, down_channels, out_size, levels=(1, 2, 3, 6),
                 key=jax.random.PRNGKey(0), compute_dtype=jnp.bfloat16,
                 out_dtype=jnp.bfloat16):
        self.in_channels = in_channels
        self.down_channels = down_channels
        self.out_size = (out_size, out_size) if isinstance(out_size, int) else tuple(out_size)
        self.levels = tuple(levels)
        self.out_channels = len(levels) * down_channels
        self.compute_dtype = compute_dtype
        self.out_dtype = out_dtype

        nl = len(self.levels)
        l2s = [l * l for l in self.levels]
        self._l2sum = sum(l2s)
        offs = [int(v) for v in np.cumsum([0] + l2s)[:-1]]

        eps = 1e-5
        raw = []          # per-level (w, scale, shift) in f32, for the reference
        w_fused, shifts = [], []
        for level in self.levels:
            key, kw, kg, kb, km, kv = jax.random.split(key, 6)
            # Conv2d(in_channels, down_channels, 1, bias=False) weight
            w = jax.random.normal(kw, (down_channels, in_channels), jnp.float32) * 0.1
            # BatchNorm2d(down_channels) params + running stats (deterministic)
            gamma = 1.0 + 0.1 * jax.random.normal(kg, (down_channels,), jnp.float32)
            beta = 0.1 * jax.random.normal(kb, (down_channels,), jnp.float32)
            run_mean = 0.1 * jax.random.normal(km, (down_channels,), jnp.float32)
            run_var = jnp.abs(1.0 + 0.1 * jax.random.normal(kv, (down_channels,), jnp.float32))
            scale = gamma / jnp.sqrt(run_var + eps)
            shift = beta - run_mean * scale
            raw.append((w, scale, shift))
            w_fused.append(scale[:, None] * w)     # fold BN scale into conv weight
            shifts.append(shift[:, None])
        self._raw_params = raw
        self.w_flat = jnp.concatenate(w_fused, axis=0).astype(compute_dtype)   # (nl*Cd, C_in)
        self.shift_flat = jnp.concatenate(shifts, axis=0)                      # (nl*Cd, 1) f32

        # Block-diagonal mask: row block li (its C_down channels) only keeps the
        # pooled columns belonging to level li.
        mask = np.zeros((nl * down_channels, self._l2sum), dtype=np.float32)
        for li, (l2, off) in enumerate(zip(l2s, offs)):
            mask[li * down_channels:(li + 1) * down_channels, off:off + l2] = 1.0
        self.mask = jnp.asarray(mask)

        self._op_cache = {}   # (H, W) -> (K_all, U_all) device arrays, built once
        self._forward = _build_forward(down_channels, nl, self._l2sum,
                                       self.out_size, compute_dtype, out_dtype)

    def _operators(self, H, W):
        key = (H, W)
        if key not in self._op_cache:
            Ho, Wo = self.out_size
            ks, us = [], []
            for level in self.levels:
                pr = adaptive_pool_matrix(H, level)          # (L, H)
                pc = adaptive_pool_matrix(W, level)          # (L, W)
                ks.append(np.kron(pr, pc).T)                 # (H*W, L*L)
                ur = bilinear_matrix(level, Ho)              # (Ho, L)
                uc = bilinear_matrix(level, Wo)              # (Wo, L)
                us.append(np.kron(ur, uc).T)                 # (L*L, Ho*Wo)
            k_all = jnp.asarray(np.concatenate(ks, axis=1), dtype=self.compute_dtype)
            u_all = jnp.asarray(np.concatenate(us, axis=0), dtype=self.compute_dtype)
            self._op_cache[key] = (jax.device_put(k_all), jax.device_put(u_all))
        return self._op_cache[key]

    def __call__(self, x):
        # x: (N, C_in, H, W)  -- NCHW float32, like the PyTorch module
        n, c_in, H, W = x.shape
        assert c_in == self.in_channels
        k_all, u_all = self._operators(H, W)
        return self._forward(x, k_all, self.w_flat, self.shift_flat, self.mask, u_all)

    # pure-JAX f32 reference (same math, unfused, no Pallas) for a sanity check
    def reference(self, x):
        n, c_in, H, W = x.shape
        Ho, Wo = self.out_size
        x_flat = x.reshape(n, c_in, H * W).astype(jnp.float32)
        feats = []
        for level, (w, scale, shift) in zip(self.levels, self._raw_params):
            k = jnp.asarray(np.kron(adaptive_pool_matrix(H, level),
                                    adaptive_pool_matrix(W, level)).T)
            u = jnp.asarray(np.kron(bilinear_matrix(level, Ho),
                                    bilinear_matrix(level, Wo)).T)
            pooled = jnp.einsum('ncp,pl->ncl', x_flat, k)
            conv = jnp.einsum('dc,ncl->ndl', w, pooled)
            y = jnp.maximum(conv * scale[None, :, None] + shift[None, :, None], 0.0)
            out = jnp.einsum('ndl,lo->ndo', y, u)
            feats.append(out.reshape(n, self.down_channels, Ho, Wo))
        return jnp.concatenate(feats, axis=1)


if __name__ == "__main__":
    key = jax.random.PRNGKey(0)
    key, kx = jax.random.split(key)

    N, C_in, H, W = 2, 4, 16, 16
    down_channels = 4
    out_size = 16
    x = jax.random.normal(kx, (N, C_in, H, W), jnp.float32)

    ppm = PyramidPoolingModulePallas(C_in, down_channels, out_size,
                                     levels=(1, 2, 3, 6), key=key)

    out = jax.block_until_ready(ppm(x))
    # second call exercises the operator cache + jit cache (no retrace/re-upload)
    out2 = jax.block_until_ready(ppm(x))

    ref = jax.block_until_ready(ppm.reference(x))
    assert out.shape == (N, 4 * down_channels, out_size, out_size), out.shape
    assert out.dtype == ppm.out_dtype
    assert bool(jnp.all(jnp.isfinite(out.astype(jnp.float32))))
    # bf16 inputs/weights/output with f32 accumulation -> compare to the f32
    # reference with a tolerance consistent with bf16 rounding.
    assert bool(jnp.allclose(out.astype(jnp.float32), ref, atol=5e-2, rtol=5e-2))
    assert bool(jnp.allclose(out2.astype(jnp.float32), out.astype(jnp.float32)))

    print("KERNEL_OK")
</pallas_src>

<mosaic_0001>
module attributes {stable_mosaic.version = 11 : i64} {
  func.func @kernel(%arg0: i32, %arg1: i32, %arg2: memref<1x4x256xf32, #tpu.memory_space<vmem>>, %arg3: memref<256x50xbf16, #tpu.memory_space<vmem>>, %arg4: memref<16x4xbf16, #tpu.memory_space<vmem>>, %arg5: memref<16x1xf32, #tpu.memory_space<vmem>>, %arg6: memref<16x50xf32, #tpu.memory_space<vmem>>, %arg7: memref<50x256xbf16, #tpu.memory_space<vmem>>, %arg8: memref<1x16x256xbf16, #tpu.memory_space<vmem>>, %arg9: memref<4x50xf32, #tpu.memory_space<vmem>>) attributes {dimension_semantics = [#tpu.dimension_semantics<parallel>, #tpu.dimension_semantics<arbitrary>], iteration_bounds = array<i64: 2, 1>, scalar_prefetch = 0 : i64, scratch_operands = 1 : i64, tpu.core_type = #tpu.core_type<tc>, window_params = [{transform_indices = @transform_0, window_bounds = array<i64: 1, 4, 256>}, {transform_indices = @transform_1, window_bounds = array<i64: 256, 50>}, {pipeline_mode = #tpu.pipeline_mode<synchronous>, transform_indices = @transform_2, window_bounds = array<i64: 16, 4>}, {pipeline_mode = #tpu.pipeline_mode<synchronous>, transform_indices = @transform_3, window_bounds = array<i64: 16, 1>}, {pipeline_mode = #tpu.pipeline_mode<synchronous>, transform_indices = @transform_4, window_bounds = array<i64: 16, 50>}, {pipeline_mode = #tpu.pipeline_mode<synchronous>, transform_indices = @transform_5, window_bounds = array<i64: 50, 256>}, {transform_indices = @transform_6, window_bounds = array<i64: 1, 16, 256>}]} {
    %c0_i32 = arith.constant 0 : i32
    %0 = arith.cmpi eq, %arg1, %c0_i32 : i32
    %1 = arith.extui %0 : i1 to i32
    %c0_i32_0 = arith.constant 0 : i32
    %2 = arith.cmpi ne, %1, %c0_i32_0 : i32
    scf.if %2 {
      %cst_11 = arith.constant 0.000000e+00 : f32
      %14 = vector.broadcast %cst_11 : f32 to vector<4x50xf32>
      %c0_12 = arith.constant 0 : index
      %c0_13 = arith.constant 0 : index
      %15 = vector.load %arg9[%c0_12, %c0_13] : memref<4x50xf32, #tpu.memory_space<vmem>>, vector<4x50xf32>
      tpu.vector_store %arg9[%c0_12, %c0_13], %14 {strides = array<i32>} : memref<4x50xf32, #tpu.memory_space<vmem>>, vector<4x50xf32>,
    } else {
    }
    %c0 = arith.constant 0 : index
    %c0_1 = arith.constant 0 : index
    %c0_2 = arith.constant 0 : index
    %3 = vector.load %arg2[%c0, %c0_1, %c0_2] : memref<1x4x256xf32, #tpu.memory_space<vmem>>, vector<1x4x256xf32>
    %4 = vector.shape_cast %3 : vector<1x4x256xf32> to vector<4x256xf32>
    %5 = arith.truncf %4 : vector<4x256xf32> to vector<4x256xbf16>
    %c0_3 = arith.constant 0 : index
    %c0_4 = arith.constant 0 : index
    %6 = vector.load %arg9[%c0_3, %c0_4] : memref<4x50xf32, #tpu.memory_space<vmem>>, vector<4x50xf32>
    %c0_5 = arith.constant 0 : index
    %c0_6 = arith.constant 0 : index
    %7 = vector.load %arg3[%c0_5, %c0_6] : memref<256x50xbf16, #tpu.memory_space<vmem>>, vector<256x50xbf16>
    %cst = arith.constant dense<0.000000e+00> : vector<4x50xf32>
    %8 = tpu.matmul %5, %7, %cst {dimension_numbers = #tpu.dot_dimension_numbers<[1], [0], [0], [1], [0, 0, 1, 1], [], []>} : vector<4x256xbf16>, vector<256x50xbf16>, vector<4x50xf32> -> vector<4x50xf32>
    %9 = arith.addf %6, %8 : vector<4x50xf32>
    %c0_7 = arith.constant 0 : index
    %c0_8 = arith.constant 0 : index
    %10 = vector.load %arg9[%c0_7, %c0_8] : memref<4x50xf32, #tpu.memory_space<vmem>>, vector<4x50xf32>
    tpu.vector_store %arg9[%c0_7, %c0_8], %9 {strides = array<i32>} : memref<4x50xf32, #tpu.memory_space<vmem>>, vector<4x50xf32>,
    %c0_i32_9 = arith.constant 0 : i32
    %11 = arith.cmpi eq, %arg1, %c0_i32_9 : i32
    %12 = arith.extui %11 : i1 to i32
    %c0_i32_10 = arith.constant 0 : i32
    %13 = arith.cmpi ne, %12, %c0_i32_10 : i32
    scf.if %13 {
      %c0_11 = arith.constant 0 : index
      %c0_12 = arith.constant 0 : index
      %14 = vector.load %arg9[%c0_11, %c0_12] : memref<4x50xf32, #tpu.memory_space<vmem>>, vector<4x50xf32>
      %15 = arith.truncf %14 : vector<4x50xf32> to vector<4x50xbf16>
      %c0_13 = arith.constant 0 : index
      %c0_14 = arith.constant 0 : index
      %16 = vector.load %arg4[%c0_13, %c0_14] : memref<16x4xbf16, #tpu.memory_space<vmem>>, vector<16x4xbf16>
      %cst_15 = arith.constant dense<0.000000e+00> : vector<16x50xf32>
      %17 = tpu.matmul %16, %15, %cst_15 {dimension_numbers = #tpu.dot_dimension_numbers<[1], [0], [0], [1], [0, 0, 1, 1], [], []>} : vector<16x4xbf16>, vector<4x50xbf16>, vector<16x50xf32> -> vector<16x50xf32>
      %c0_16 = arith.constant 0 : index
      %c0_17 = arith.constant 0 : index
      %18 = vector.load %arg5[%c0_16, %c0_17] : memref<16x1xf32, #tpu.memory_space<vmem>>, vector<16x1xf32>
      %19 = vector.broadcast %18 : vector<16x1xf32> to vector<16x50xf32>
      %20 = arith.addf %17, %19 : vector<16x50xf32>
      %cst_18 = arith.constant 0.000000e+00 : f32
      %21 = vector.broadcast %cst_18 : f32 to vector<16x50xf32>
      %22 = arith.maximumf %20, %21 : vector<16x50xf32>
      %c0_19 = arith.constant 0 : index
      %c0_20 = arith.constant 0 : index
      %23 = vector.load %arg6[%c0_19, %c0_20] : memref<16x50xf32, #tpu.memory_space<vmem>>, vector<16x50xf32>
      %24 = arith.mulf %22, %23 : vector<16x50xf32>
      %25 = arith.truncf %24 : vector<16x50xf32> to vector<16x50xbf16>
      %c0_21 = arith.constant 0 : index
      %c0_22 = arith.constant 0 : index
      %26 = vector.load %arg7[%c0_21, %c0_22] : memref<50x256xbf16, #tpu.memory_space<vmem>>, vector<50x256xbf16>
      %cst_23 = arith.constant dense<0.000000e+00> : vector<16x256xf32>
      %27 = tpu.matmul %25, %26, %cst_23 {dimension_numbers = #tpu.dot_dimension_numbers<[1], [0], [0], [1], [0, 0, 1, 1], [], []>} : vector<16x50xbf16>, vector<50x256xbf16>, vector<16x256xf32> -> vector<16x256xf32>
      %28 = arith.truncf %27 : vector<16x256xf32> to vector<16x256xbf16>
      %c0_24 = arith.constant 0 : index
      %c0_25 = arith.constant 0 : index
      %c0_26 = arith.constant 0 : index
      %29 = vector.load %arg8[%c0_24, %c0_25, %c0_26] : memref<1x16x256xbf16, #tpu.memory_space<vmem>>, vector<1x16x256xbf16>
      %30 = vector.shape_cast %29 : vector<1x16x256xbf16> to vector<16x256xbf16>
      %31 = vector.shape_cast %28 : vector<16x256xbf16> to vector<1x16x256xbf16>
      tpu.vector_store %arg8[%c0_24, %c0_25, %c0_26], %31 {strides = array<i32>} : memref<1x16x256xbf16, #tpu.memory_space<vmem>>, vector<1x16x256xbf16>,
    } else {
    }
    return
  }
  func.func @transform_0(%arg0: i32, %arg1: i32) -> (i32, i32, i32) {
    %c0_i32 = arith.constant 0 : i32
    %c0_i32_0 = arith.constant 0 : i32
    return %arg0, %c0_i32, %arg1 : i32, i32, i32
  }
  func.func @transform_1(%arg0: i32, %arg1: i32) -> (i32, i32) {
    %c0_i32 = arith.constant 0 : i32
    %c0_i32_0 = arith.constant 0 : i32
    return %arg1, %c0_i32 : i32, i32
  }
  func.func @transform_2(%arg0: i32, %arg1: i32) -> (i32, i32) {
    %c0_i32 = arith.constant 0 : i32
    %c0_i32_0 = arith.constant 0 : i32
    %c0_i32_1 = arith.constant 0 : i32
    return %c0_i32, %c0_i32_0 : i32, i32
  }
  func.func @transform_3(%arg0: i32, %arg1: i32) -> (i32, i32) {
    %c0_i32 = arith.constant 0 : i32
    %c0_i32_0 = arith.constant 0 : i32
    %c0_i32_1 = arith.constant 0 : i32
    return %c0_i32, %c0_i32_0 : i32, i32
  }
  func.func @transform_4(%arg0: i32, %arg1: i32) -> (i32, i32) {
    %c0_i32 = arith.constant 0 : i32
    %c0_i32_0 = arith.constant 0 : i32
    %c0_i32_1 = arith.constant 0 : i32
    return %c0_i32, %c0_i32_0 : i32, i32
  }
  func.func @transform_5(%arg0: i32, %arg1: i32) -> (i32, i32) {
    %c0_i32 = arith.constant 0 : i32
    %c0_i32_0 = arith.constant 0 : i32
    %c0_i32_1 = arith.constant 0 : i32
    return %c0_i32, %c0_i32_0 : i32, i32
  }
  func.func @transform_6(%arg0: i32, %arg1: i32) -> (i32, i32, i32) {
    %c0_i32 = arith.constant 0 : i32
    %c0_i32_0 = arith.constant 0 : i32
    %c0_i32_1 = arith.constant 0 : i32
    return %arg0, %c0_i32, %c0_i32_0 : i32, i32, i32
  }
}

</mosaic_0001>

<llo_original>
// kernel: forward.1
$region0: #{forward.1}
  #allocation0 [shape = 'u32[]', space=smem, size = 0x4, offset = 0x4, fixed_abs, tag = 'smem constant byte address 0x4 - core index']
  #allocation1 [shape = 'u32[144,128]{1,0:T(1,128)}', space=vmem, size = 0x12000, scoped, tag = 'internal scratch']
  #allocation2 [shape = 'f32[4,50]{1,0:T(4,128)}', space=vmem, size = 0x800, scoped, tag = 'scratch operand']
  %s0 = inlined_call_operand.vmem [shape: f32[2,4,256], index: 0, kind: input, shape index: {}]
  %s1 = inlined_call_operand.vmem [shape: bf16[256,50], index: 1, kind: input, shape index: {}]
  %s2 = inlined_call_operand.vmem [shape: bf16[16,4], index: 2, kind: input, shape index: {}]
  %s3 = inlined_call_operand.vmem [shape: f32[16,1], index: 3, kind: input, shape index: {}]
  %s4 = inlined_call_operand.vmem [shape: f32[16,50], index: 4, kind: input, shape index: {}]
  %s5 = inlined_call_operand.vmem [shape: bf16[50,256], index: 5, kind: input, shape index: {}]
  %s6 = inlined_call_operand.vmem [shape: bf16[2,16,256], index: 6, kind: output, shape index: {}]
  %s7 = sld [smem:[#allocation0]]
  $region65: #{forward.1} parent=0
    _
  %s9 = ssub.s32 1, %s7
  %s10 = scalar_select 0, %s9, %s7
  loop: start=0, step=1, limit=4
  $region2: #{forward.1} parent=0 // loop_pre_header
    _
  $region3: #{forward.1} parent=0 // loop_header
    %s12 = sphi 0, %s16
    %p13 = scmp.ge.s32.totalorder %s12, 4
    %s19 = sphi 0, %s31
    %s20 = sphi 0, %s27
    %s21 = sphi 0, %s19
    %s22 = sphi 0, %s20
    %s23 = sphi 0, %s21
    %s24 = sphi 0, %s22
    %s36 = sphi 0, %s38
    %s39 = sphi 0, %s36
    %s40 = sphi 0, %s39
    %s56 = sphi 0, %s40
    %s62 = sphi 0, %s64
    %s65 = sphi 0, %s62
    %s66 = sphi 0, %s65
    %s82 = sphi 0, %s66
    %s86 = sphi 0, %s86
    %s88 = sphi 0, %s86
    %s89 = sphi 0, %s88
    %s103 = sphi 0, %s89
    %s107 = sphi 0, %s107
    %s109 = sphi 0, %s107
    %s110 = sphi 0, %s109
    %s124 = sphi 0, %s110
    %s128 = sphi 0, %s128
    %s130 = sphi 0, %s128
    %s131 = sphi 0, %s130
    %s145 = sphi 0, %s131
    %s149 = sphi 0, %s149
    %s151 = sphi 0, %s149
    %s152 = sphi 0, %s151
    %s166 = sphi 0, %s152
    %s172 = sphi 0, %s174
    %s175 = sphi 0, %s172
    %s176 = sphi 0, %s175
    %s192 = sphi 0, %s176
  $region4: #{forward.1} parent=0 // loop_header_branch
    %15 = sbr.rel (%p13) target = $region8
  $region5: #{forward.1} parent=0 // loop_body
    %s17 = ssub.s32 %s12, 1
    %s18 = ssub.s32 %s12, 2
    %s25 = sadd.s32 1, %s20
    %p26 = scmp.ge.s32.totalorder %s25, 1
    %s27 = scalar_select %p26, 0, %s25
    %s28 = sadd.s32 1, %s19
    %s29 = scalar_select %p26, %s28, %s19
    %p30 = scmp.ge.s32.totalorder %s29, 2
    %s31 = scalar_select %p30, 0, %s29
    %s32 = ssub.s32 %s19, %s31
    %s33 = ssub.s32 %s20, %s27
    %s34 = sor.u32 %s32, %s33
    %p35 = scmp.eq.s32.totalorder %s34, 0
    %s37 = sadd.s32 %s36, 1
    %s38 = scalar_select %p35, %s36, %s37
    %p41 = pneg %p35
    %p42 = scmp.eq.s32.totalorder %s12, 1
    %p43 = por %p41, %p42
    %p44 = scmp.ne.s32.totalorder %s36, %s39
    %p45 = scmp.eq.s32.totalorder %s12, 0
    %p46 = por %p44, %p45
    %p47 = scmp.ne.s32.totalorder %s36, %s39
    %p48 = scmp.eq.s32.totalorder %s17, 1
    %p49 = por %p47, %p48
    %p50 = scmp.ne.s32.totalorder %s39, %s40
    %p51 = scmp.eq.s32.totalorder %s17, 0
    %p52 = por %p50, %p51
    %p53 = scmp.ne.s32.totalorder %s39, %s40
    %p54 = scmp.eq.s32.totalorder %s18, 1
    %p55 = por %p53, %p54
    %p57 = scmp.ne.s32.totalorder %s40, %s56
    %p58 = scmp.eq.s32.totalorder %s18, 0
    %p59 = por %p57, %p58
    %s60 = ssub.s32 %s20, %s27
    %p61 = scmp.eq.s32.totalorder %s60, 0
    %s63 = sadd.s32 %s62, 1
    %s64 = scalar_select %p61, %s62, %s63
    %p67 = pneg %p61
    %p68 = scmp.eq.s32.totalorder %s12, 1
    %p69 = por %p67, %p68
    %p70 = scmp.ne.s32.totalorder %s62, %s65
    %p71 = scmp.eq.s32.totalorder %s12, 0
    %p72 = por %p70, %p71
    %p73 = scmp.ne.s32.totalorder %s62, %s65
    %p74 = scmp.eq.s32.totalorder %s17, 1
    %p75 = por %p73, %p74
    %p76 = scmp.ne.s32.totalorder %s65, %s66
    %p77 = scmp.eq.s32.totalorder %s17, 0
    %p78 = por %p76, %p77
    %p79 = scmp.ne.s32.totalorder %s65, %s66
    %p80 = scmp.eq.s32.totalorder %s18, 1
    %p81 = por %p79, %p80
    %p83 = scmp.ne.s32.totalorder %s66, %s82
    %p84 = scmp.eq.s32.totalorder %s18, 0
    %p85 = por %p83, %p84
    %s87 = sadd.s32 %s86, 1
    %p90 = scmp.eq.s32.totalorder %s12, 1
    %p91 = scmp.ne.s32.totalorder %s86, %s88
    %p92 = scmp.eq.s32.totalorder %s12, 0
    %p93 = por %p91, %p92
    %p94 = scmp.ne.s32.totalorder %s86, %s88
    %p95 = scmp.eq.s32.totalorder %s17, 1
    %p96 = por %p94, %p95
    %p97 = scmp.ne.s32.totalorder %s88, %s89
    %p98 = scmp.eq.s32.totalorder %s17, 0
    %p99 = por %p97, %p98
    %p100 = scmp.ne.s32.totalorder %s88, %s89
    %p101 = scmp.eq.s32.totalorder %s18, 1
    %p102 = por %p100, %p101
    %p104 = scmp.ne.s32.totalorder %s89, %s103
    %p105 = scmp.eq.s32.totalorder %s18, 0
    %p106 = por %p104, %p105
    %s108 = sadd.s32 %s107, 1
    %p111 = scmp.eq.s32.totalorder %s12, 1
    %p112 = scmp.ne.s32.totalorder %s107, %s109
    %p113 = scmp.eq.s32.totalorder %s12, 0
    %p114 = por %p112, %p113
    %p115 = scmp.ne.s32.totalorder %s107, %s109
    %p116 = scmp.eq.s32.totalorder %s17, 1
    %p117 = por %p115, %p116
    %p118 = scmp.ne.s32.totalorder %s109, %s110
    %p119 = scmp.eq.s32.totalorder %s17, 0
    %p120 = por %p118, %p119
    %p121 = scmp.ne.s32.totalorder %s109, %s110
    %p122 = scmp.eq.s32.totalorder %s18, 1
    %p123 = por %p121, %p122
    %p125 = scmp.ne.s32.totalorder %s110, %s124
    %p126 = scmp.eq.s32.totalorder %s18, 0
    %p127 = por %p125, %p126
    %s129 = sadd.s32 %s128, 1
    %p132 = scmp.eq.s32.totalorder %s12, 1
    %p133 = scmp.ne.s32.totalorder %s128, %s130
    %p134 = scmp.eq.s32.totalorder %s12, 0
    %p135 = por %p133, %p134
    %p136 = scmp.ne.s32.totalorder %s128, %s130
    %p137 = scmp.eq.s32.totalorder %s17, 1
    %p138 = por %p136, %p137
    %p139 = scmp.ne.s32.totalorder %s130, %s131
    %p140 = scmp.eq.s32.totalorder %s17, 0
    %p141 = por %p139, %p140
    %p142 = scmp.ne.s32.totalorder %s130, %s131
    %p143 = scmp.eq.s32.totalorder %s18, 1
    %p144 = por %p142, %p143
    %p146 = scmp.ne.s32.totalorder %s131, %s145
    %p147 = scmp.eq.s32.totalorder %s18, 0
    %p148 = por %p146, %p147
    %s150 = sadd.s32 %s149, 1
    %p153 = scmp.eq.s32.totalorder %s12, 1
    %p154 = scmp.ne.s32.totalorder %s149, %s151
    %p155 = scmp.eq.s32.totalorder %s12, 0
    %p156 = por %p154, %p155
    %p157 = scmp.ne.s32.totalorder %s149, %s151
    %p158 = scmp.eq.s32.totalorder %s17, 1
    %p159 = por %p157, %p158
    %p160 = scmp.ne.s32.totalorder %s151, %s152
    %p161 = scmp.eq.s32.totalorder %s17, 0
    %p162 = por %p160, %p161
    %p163 = scmp.ne.s32.totalorder %s151, %s152
    %p164 = scmp.eq.s32.totalorder %s18, 1
    %p165 = por %p163, %p164
    %p167 = scmp.ne.s32.totalorder %s152, %s166
    %p168 = scmp.eq.s32.totalorder %s18, 0
    %p169 = por %p167, %p168
    %s170 = ssub.s32 %s19, %s31
    %p171 = scmp.eq.s32.totalorder %s170, 0
    %s173 = sadd.s32 %s172, 1
    %s174 = scalar_select %p171, %s172, %s173
    %p177 = pneg %p171
    %p178 = scmp.eq.s32.totalorder %s12, 1
    %p179 = por %p177, %p178
    %p180 = scmp.ne.s32.totalorder %s172, %s175
    %p181 = scmp.eq.s32.totalorder %s12, 0
    %p182 = por %p180, %p181
    %p183 = scmp.ne.s32.totalorder %s172, %s175
    %p184 = scmp.eq.s32.totalorder %s17, 1
    %p185 = por %p183, %p184
    %p186 = scmp.ne.s32.totalorder %s175, %s176
    %p187 = scmp.eq.s32.totalorder %s17, 0
    %p188 = por %p186, %p187
    %p189 = scmp.ne.s32.totalorder %s175, %s176
    %p190 = scmp.eq.s32.totalorder %s18, 1
    %p191 = por %p189, %p190
    %p193 = scmp.ne.s32.totalorder %s176, %s192
    %p194 = scmp.eq.s32.totalorder %s18, 0
    %p195 = por %p193, %p194
    %p196 = scmp.le.s32.totalorder 1, %s12
    %p197 = scmp.lt.s32.totalorder %s12, 3
    %p198 = pnand %p196, %p197
    %p199 = pneg %p198
    // Predicated region
    $region9: #{forward.1} parent=5 // pred_check
      _
    $region10: #{forward.1} parent=5 // pred_check_branch
      %201 = sbr.rel (%p198) target = $region12
    $region11: #{forward.1} parent=5 // pred_region
      %s202 = ssub.s32 %s12, 1
      // Predicated region
      $region13: #{forward.1} parent=11 // pred_check
        %p203 = pneg %p78
      $region14: #{forward.1} parent=11 // pred_check_branch
        %205 = sbr.rel (%p203) target = $region16
      $region15: #{forward.1} parent=11 // pred_region
        %s206 = smul.u32 32, %s22
        %p207 = scmp.lt.s32.totalorder %s206, 31
        %s208 = scalar_select %p207, %s206, 31
        %s209 = smul.addr %s208, 4
        %s210 = scalar_lea.vmem %s1, %s209
        %s211 = smul.u32 32, %s22
      $region16: #{forward.1} parent=11 // pred_fallthru
        _
      // Predicated region
      $region17: #{forward.1} parent=11 // pred_check
        %p212 = pneg %p99
      $region18: #{forward.1} parent=11 // pred_check_branch
        %214 = sbr.rel (%p212) target = $region20
      $region19: #{forward.1} parent=11 // pred_region
        _
      $region20: #{forward.1} parent=11 // pred_fallthru
        _
      // Predicated region
      $region21: #{forward.1} parent=11 // pred_check
        %p215 = pneg %p120
      $region22: #{forward.1} parent=11 // pred_check_branch
        %217 = sbr.rel (%p215) target = $region24
      $region23: #{forward.1} parent=11 // pred_region
        _
      $region24: #{forward.1} parent=11 // pred_fallthru
        _
      // Predicated region
      $region25: #{forward.1} parent=11 // pred_check
        %p218 = pneg %p141
      $region26: #{forward.1} parent=11 // pred_check_branch
        %220 = sbr.rel (%p218) target = $region28
      $region27: #{forward.1} parent=11 // pred_region
        _
      $region28: #{forward.1} parent=11 // pred_fallthru
        _
      // Predicated region
      $region29: #{forward.1} parent=11 // pred_check
        %p221 = pneg %p162
      $region30: #{forward.1} parent=11 // pred_check_branch
        %223 = sbr.rel (%p221) target = $region32
      $region31: #{forward.1} parent=11 // pred_region
        _
      $region32: #{forward.1} parent=11 // pred_fallthru
        _
    $region12: #{forward.1} parent=5 // pred_fallthru
      _
    %p224 = scmp.lt.s32.totalorder %s12, 2
    // Predicated region
    $region33: #{forward.1} parent=5 // pred_check
      %p225 = pneg %p224
    $region34: #{forward.1} parent=5 // pred_check_branch
      %227 = sbr.rel (%p225) target = $region36
    $region35: #{forward.1} parent=5 // pred_region
      // Predicated region
      $region37: #{forward.1} parent=35 // pred_check
        %p228 = pneg %p46
      $region38: #{forward.1} parent=35 // pred_check_branch
        %230 = sbr.rel (%p228) target = $region40
      $region39: #{forward.1} parent=35 // pred_region
        %s231 = smul.u32 2, %s20
        %p232 = scmp.lt.s32.totalorder %s19, 1
        %s233 = scalar_select %p232, %s19, 1
        %p234 = scmp.lt.s32.totalorder %s231, 1
        %s235 = scalar_select %p234, %s231, 1
        %s236 = smul.addr %s233, 2
        %s237 = sadd.s32 %s235, %s236
        %s238 = smul.addr %s237, 4
        %s239 = scalar_lea.vmem %s0, %s238
        %s240 = smul.u32 2, %s20
      $region40: #{forward.1} parent=35 // pred_fallthru
        _
    $region36: #{forward.1} parent=5 // pred_fallthru
      _
    %p241 = scmp.le.s32.totalorder 1, %s12
    %p242 = scmp.lt.s32.totalorder %s12, 3
    %p243 = pnand %p241, %p242
    %p244 = pneg %p243
    // Predicated region
    $region41: #{forward.1} parent=5 // pred_check
      _
    $region42: #{forward.1} parent=5 // pred_check_branch
      %246 = sbr.rel (%p243) target = $region44
    $region43: #{forward.1} parent=5 // pred_region
      %s247 = ssub.s32 %s12, 1
      %s248 = smul.u32 2, %s22
      %p249 = scmp.lt.s32.totalorder %s21, 1
      %s250 = scalar_select %p249, %s21, 1
      %p251 = scmp.lt.s32.totalorder %s248, 1
      %s252 = scalar_select %p251, %s248, 1
      %s253 = smul.addr %s250, 2
      %s254 = sadd.s32 %s252, %s253
      %s255 = smul.addr %s254, 4
      %s256 = scalar_lea.vmem %s0, %s255
      %p257 = pneg %p52
      %p258 = pneg %p49
      %s259 = smul.u32 32, %s22
      %p260 = scmp.lt.s32.totalorder %s259, 31
      %s261 = scalar_select %p260, %s259, 31
      %s262 = smul.addr %s261, 4
      %s263 = scalar_lea.vmem %s1, %s262
      %p264 = pneg %p78
      %p265 = pneg %p75
      %p266 = pneg %p99
      %p267 = pneg %p96
      %p268 = pneg %p120
      %p269 = pneg %p117
      %p270 = pneg %p141
      %p271 = pneg %p138
      %p272 = pneg %p162
      %p273 = pneg %p159
      %p274 = pneg %p188
      %p275 = pneg %p185
      %p276 = scmp.lt.s32.totalorder %s21, 1
      %s277 = scalar_select %p276, %s21, 1
      %s278 = smul.addr %s277, 4
      %s279 = smul.addr %s278, 4
      %s280 = scalar_lea.vmem %s6, %s279
      %s281 = smul.u32 2, %s22
      %p282 = scmp.lt.s32.totalorder %s21, 1
      %s283 = scalar_select %p282, %s21, 1
      %p284 = scmp.lt.s32.totalorder %s281, 1
      %s285 = scalar_select %p284, %s281, 1
      %s286 = smul.addr %s283, 2
      %s287 = sadd.s32 %s285, %s286
      %s288 = smul.addr %s287, 4
      %s289 = scalar_lea.vmem %s0, %s288
      %s290 = smul.u32 2, %s22
      %s291 = smul.u32 32, %s22
      %p292 = scmp.lt.s32.totalorder %s291, 31
      %s293 = scalar_select %p292, %s291, 31
      %s294 = smul.addr %s293, 4
      %s295 = scalar_lea.vmem %s1, %s294
      %s296 = smul.u32 32, %s22
      %p297 = scmp.lt.s32.totalorder %s21, 1
      %s298 = scalar_select %p297, %s21, 1
      %s299 = smul.addr %s298, 4
      %s300 = smul.addr %s299, 4
      %s301 = scalar_lea.vmem %s6, %s300
      %p303 = scmp.eq.s32.totalorder %s22, 0
      // Predicated region
      $region45: #{forward.1} parent=43 // pred_check
        %p304 = pneg %p303
      $region46: #{forward.1} parent=43 // pred_check_branch
        %306 = sbr.rel (%p304) target = $region48
      $region47: #{forward.1} parent=43 // pred_region
        %vm307 = vcmask 404480
        %308 = vst.msk [vmem:[#allocation2] sm:$0xf] %vm307, 0.0
      $region48: #{forward.1} parent=43 // pred_fallthru
        _
      %v309 = vld [vmem:[%s289] sm:$0xff]
      %v311 = vcombine.high %v309, %v309
      %v313 = vpack.c.bf16 %v309, %v309
      %v314 = vpack.c.bf16 %v311, %v311
      %v315 = vld [vmem:[#allocation2] sm:$0xf]
      %v316 = vld [vmem:[%s295] sm:$0xf]
      %v317 = vld [vmem:[%s295 + $0x4] sm:$0xf]
      %v318 = vld [vmem:[%s295 + $0x8] sm:$0xf]
      %v319 = vld [vmem:[%s295 + $0xc] sm:$0xf]
      %v320 = vld [vmem:[%s295 + $0x10] sm:$0xf]
      %v321 = vld [vmem:[%s295 + $0x14] sm:$0xf]
      %v322 = vld [vmem:[%s295 + $0x18] sm:$0xf]
      %v323 = vld [vmem:[%s295 + $0x1c] sm:$0xf]
      %v324 = vld [vmem:[%s295 + $0x20] sm:$0xf]
      %v325 = vld [vmem:[%s295 + $0x24] sm:$0xf]
      %v326 = vld [vmem:[%s295 + $0x28] sm:$0xf]
      %v327 = vld [vmem:[%s295 + $0x2c] sm:$0xf]
      %v328 = vld [vmem:[%s295 + $0x30] sm:$0xf]
      %v329 = vld [vmem:[%s295 + $0x34] sm:$0xf]
      %v330 = vld [vmem:[%s295 + $0x38] sm:$0xf]
      %v331 = vld [vmem:[%s295 + $0x3c] sm:$0xf]
      %v332 = vld [vmem:[%s295 + $0x40] sm:$0xf]
      %v333 = vld [vmem:[%s295 + $0x44] sm:$0xf]
      %v334 = vld [vmem:[%s295 + $0x48] sm:$0xf]
      %v335 = vld [vmem:[%s295 + $0x4c] sm:$0xf]
      %v336 = vld [vmem:[%s295 + $0x50] sm:$0xf]
      %v337 = vld [vmem:[%s295 + $0x54] sm:$0xf]
      %v338 = vld [vmem:[%s295 + $0x58] sm:$0xf]
      %v339 = vld [vmem:[%s295 + $0x5c] sm:$0xf]
      %v340 = vld [vmem:[%s295 + $0x60] sm:$0xf]
      %v341 = vld [vmem:[%s295 + $0x64] sm:$0xf]
      %v342 = vld [vmem:[%s295 + $0x68] sm:$0xf]
      %v343 = vld [vmem:[%s295 + $0x6c] sm:$0xf]
      %v344 = vld [vmem:[%s295 + $0x70] sm:$0xf]
      %v345 = vld [vmem:[%s295 + $0x74] sm:$0xf]
      %v346 = vld [vmem:[%s295 + $0x78] sm:$0xf]
      %v347 = vld [vmem:[%s295 + $0x7c] sm:$0xf]
      %v380 = vunpack.c.l.b16 %v316
      %v381 = vunpack.c.l.b16 %v317
      %v382 = vunpack.c.l.b16 %v318
      %v383 = vunpack.c.l.b16 %v319
      %v384 = vunpack.c.l.b16 %v320
      %v385 = vunpack.c.l.b16 %v321
      %v386 = vunpack.c.l.b16 %v322
      %v387 = vunpack.c.l.b16 %v323
      %v388 = vunpack.c.l.b16 %v324
      %v389 = vunpack.c.l.b16 %v325
      %v390 = vunpack.c.l.b16 %v326
      %v391 = vunpack.c.l.b16 %v327
      %v392 = vunpack.c.l.b16 %v328
      %v393 = vunpack.c.l.b16 %v329
      %v394 = vunpack.c.l.b16 %v330
      %v395 = vunpack.c.l.b16 %v331
      %v396 = vunpack.c.l.b16 %v332
      %v397 = vunpack.c.l.b16 %v333
      %v398 = vunpack.c.l.b16 %v334
      %v399 = vunpack.c.l.b16 %v335
      %v400 = vunpack.c.l.b16 %v336
      %v401 = vunpack.c.l.b16 %v337
      %v402 = vunpack.c.l.b16 %v338
      %v403 = vunpack.c.l.b16 %v339
      %v404 = vunpack.c.l.b16 %v340
      %v405 = vunpack.c.l.b16 %v341
      %v406 = vunpack.c.l.b16 %v342
      %v407 = vunpack.c.l.b16 %v343
      %v408 = vunpack.c.l.b16 %v344
      %v409 = vunpack.c.l.b16 %v345
      %v410 = vunpack.c.l.b16 %v346
      %v411 = vunpack.c.l.b16 %v347
      %v412 = vpack.c.b16 %v381, %v380
      %v413 = vpack.c.b16 %v383, %v382
      %v414 = vpack.c.b16 %v385, %v384
      %v415 = vpack.c.b16 %v387, %v386
      %v416 = vpack.c.b16 %v389, %v388
      %v417 = vpack.c.b16 %v391, %v390
      %v418 = vpack.c.b16 %v393, %v392
      %v419 = vpack.c.b16 %v395, %v394
      %v420 = vpack.c.b16 %v397, %v396
      %v421 = vpack.c.b16 %v399, %v398
      %v422 = vpack.c.b16 %v401, %v400
      %v423 = vpack.c.b16 %v403, %v402
      %v424 = vpack.c.b16 %v405, %v404
      %v425 = vpack.c.b16 %v407, %v406
      %v426 = vpack.c.b16 %v409, %v408
      %v427 = vpack.c.b16 %v411, %v410
      %444 = vmatprep.subr.bf16.mxu0 0
      %445 = vmatpush1.bf16.msra.mxu0 %v419
      %446 = vmatprep.subr.bf16.mxu0 0
      %447 = vmatpush1.bf16.msra.mxu0 %v418
      %448 = vmatprep.subr.bf16.mxu0 0
      %449 = vmatpush1.bf16.msra.mxu0 %v417
      %450 = vmatprep.subr.bf16.mxu0 0
      %451 = vmatpush1.bf16.msra.mxu0 %v416
      %452 = vmatprep.subr.bf16.mxu0 0
      %453 = vmatpush1.bf16.msra.mxu0 %v415
      %454 = vmatprep.subr.bf16.mxu0 0
      %455 = vmatpush1.bf16.msra.mxu0 %v414
      %456 = vmatprep.subr.bf16.mxu0 0
      %457 = vmatpush1.bf16.msra.mxu0 %v413
      %458 = vmatprep.subr.bf16.mxu0 0
      %459 = vmatpush1.bf16.msra.mxu0 %v412
      %460 = vmatprep.subr.bf16.mxu0 0
      %461 = vmatpush2.bf16.msra.mxu0 %v427
      %462 = vmatprep.subr.bf16.mxu0 0
      %463 = vmatpush2.bf16.msra.mxu0 %v426
      %464 = vmatprep.subr.bf16.mxu0 0
      %465 = vmatpush2.bf16.msra.mxu0 %v425
      %466 = vmatprep.subr.bf16.mxu0 0
      %467 = vmatpush2.bf16.msra.mxu0 %v424
      %468 = vmatprep.subr.bf16.mxu0 0
      %469 = vmatpush2.bf16.msra.mxu0 %v423
      %470 = vmatprep.subr.bf16.mxu0 0
      %471 = vmatpush2.bf16.msra.mxu0 %v422
      %472 = vmatprep.subr.bf16.mxu0 0
      %473 = vmatpush2.bf16.msra.mxu0 %v421
      %474 = vmatprep.subr.bf16.mxu0 0
      %475 = vmatpush2.bf16.msra.mxu0 %v420
      %476 = vmatprep.mubr.bf16.mxu0 %v314
      %477 = vmatmul.mubr.bf16.gmra.mxu0 %v313
      %v478 = vpop.f32.mrf.mxu0
      %v479 = vadd.f32 0.0, %v478
      %v480 = vpop.f32.mrf.mxu0
      %v481 = vpop.f32.mrf.mxu0
      %v482 = vpop.f32.mrf.mxu0
      %483 = vdwg.mxu0
      %v484 = vadd.f32 %v315, %v479
      %vm485 = vcmask 404480
      %486 = vst.msk [vmem:[#allocation2] sm:$0xf] %vm485, %v484
      // Predicated region
      $region49: #{forward.1} parent=43 // pred_check
        %p487 = pneg %p303
      $region50: #{forward.1} parent=43 // pred_check_branch
        %489 = sbr.rel (%p487) target = $region52
      $region51: #{forward.1} parent=43 // pred_region
        %v490 = vld [vmem:[#allocation2] sm:$0xf]
        %v491 = vpack.c.bf16 %v490, %v490
        %v492 = vld [vmem:[%s2] sm:$0xf]
        %v493 = vld [vmem:[%s2 + $0x4] sm:$0xf]
        %v494 = vld [vmem:[%s3] sm:$0xff]
        %v495 = vld [vmem:[%s3 + $0x8] sm:$0xff]
        %497 = vset.pattern.permute.xlu0 0
        %498 = vperm.xlu0 %497, %v494
        %v499 = vpop.permute.xlu0 %498
        %502 = vset.pattern.permute.xlu0 0
        %503 = vperm.xlu0 %502, %v495
        %v504 = vpop.permute.xlu0 %503
        %v508 = vunpack.c.l.b16 %v492
        %v509 = vunpack.c.l.b16 %v493
        %v510 = vpack.c.b16 %v509, %v508
        %vm511 = vcmask 31744
        %v513 = vsel %vm511, %v510, 0
        %vm515 = vcmask 1041408
        %v517 = vsel %vm515, %v491, 0
        %519 = vmatprep.subr.bf16.mxu0 0
        %520 = vmatpush1.bf16.msra.mxu0 0
        %521 = vmatprep.subr.bf16.mxu0 0
        %522 = vmatpush1.bf16.msra.mxu0 0
        %523 = vmatprep.subr.bf16.mxu0 0
        %524 = vmatpush1.bf16.msra.mxu0 0
        %525 = vmatprep.subr.bf16.mxu0 0
        %526 = vmatpush1.bf16.msra.mxu0 0
        %527 = vmatprep.subr.bf16.mxu0 0
        %528 = vmatpush1.bf16.msra.mxu0 0
        %529 = vmatprep.subr.bf16.mxu0 0
        %530 = vmatpush1.bf16.msra.mxu0 0
        %531 = vmatprep.subr.bf16.mxu0 0
        %532 = vmatpush1.bf16.msra.mxu0 0
        %533 = vmatprep.subr.bf16.mxu0 0
        %534 = vmatpush1.bf16.msra.mxu0 %v517
        %535 = vmatprep.subr.bf16.mxu0 0
        %536 = vmatpush2.bf16.msra.mxu0 0
        %537 = vmatprep.subr.bf16.mxu0 0
        %538 = vmatpush2.bf16.msra.mxu0 0
        %539 = vmatprep.subr.bf16.mxu0 0
        %540 = vmatpush2.bf16.msra.mxu0 0
        %541 = vmatprep.subr.bf16.mxu0 0
        %542 = vmatpush2.bf16.msra.mxu0 0
        %543 = vmatprep.subr.bf16.mxu0 0
        %544 = vmatpush2.bf16.msra.mxu0 0
        %545 = vmatprep.subr.bf16.mxu0 0
        %546 = vmatpush2.bf16.msra.mxu0 0
        %547 = vmatprep.subr.bf16.mxu0 0
        %548 = vmatpush2.bf16.msra.mxu0 0
        %549 = vmatprep.subr.bf16.mxu0 0
        %550 = vmatpush2.bf16.msra.mxu0 0
        %551 = vmatprep.mubr.bf16.mxu0 0
        %552 = vmatmul.mubr.bf16.gmra.mxu0 %v513
        %v553 = vpop.f32.mrf.mxu0
        %v554 = vadd.f32 %v499, %v553
        %v555 = vpop.f32.mrf.mxu0
        %v556 = vpop.f32.mrf.mxu0
        %v557 = vadd.f32 %v504, %v556
        %v558 = vpop.f32.mrf.mxu0
        %559 = vdwg.mxu0
        %v560 = vmax.f32 %v554, 0.0
        %v561 = vmax.f32 %v557, 0.0
        %v562 = vld [vmem:[%s4] sm:$0xff]
        %v563 = vld [vmem:[%s4 + $0x8] sm:$0xff]
        %v564 = vmul.f32 %v560, %v562
        %v565 = vmul.f32 %v561, %v563
        %v566 = vpack.c.bf16 %v565, %v564
        %v567 = vld [vmem:[%s5] sm:$0xff]
        %v568 = vld [vmem:[%s5 + $0x8] sm:$0xff]
        %v569 = vld [vmem:[%s5 + $0x10] sm:$0xff]
        %v570 = vld [vmem:[%s5 + $0x18] sm:$0xff]
        %v571 = vld [vmem:[%s5 + $0x20] sm:$0xff]
        %v572 = vld [vmem:[%s5 + $0x28] sm:$0xff]
        %v573 = vld [vmem:[%s5 + $0x30] sm:$0x11]
        %v581 = vunpack.c.l.b16 %v567
        %v582 = vunpack.c.h.b16 %v567
        %v583 = vunpack.c.l.b16 %v568
        %v584 = vunpack.c.h.b16 %v568
        %v585 = vunpack.c.l.b16 %v569
        %v586 = vunpack.c.h.b16 %v569
        %v587 = vunpack.c.l.b16 %v570
        %v588 = vunpack.c.h.b16 %v570
        %v589 = vunpack.c.l.b16 %v571
        %v590 = vunpack.c.h.b16 %v571
        %v591 = vunpack.c.l.b16 %v572
        %v592 = vunpack.c.h.b16 %v572
        %v593 = vunpack.c.l.b16 %v573
        %v594 = vunpack.c.h.b16 %v573
        %v595 = vpack.c.b16 %v583, %v581
        %v596 = vpack.c.b16 %v584, %v582
        %v597 = vpack.c.b16 %v587, %v585
        %v598 = vpack.c.b16 %v588, %v586
        %v599 = vpack.c.b16 %v591, %v589
        %v600 = vpack.c.b16 %v592, %v590
        %v601 = vpack.c.b16 %v593, %v593
        %v602 = vpack.c.b16 %v594, %v594
        %vm609 = vcmask 408576
        %v611 = vsel %vm609, %v566, 0
        %vm613 = vcmask 1040384
        %v615 = vsel %vm613, %v601, 0
        %v618 = vsel %vm613, %v602, 0
        %620 = vmatprep.subr.bf16.mxu0 0
        %621 = vmatpush1.bf16.msra.mxu0 0
        %622 = vmatprep.subr.bf16.mxu0 0
        %623 = vmatpush1.bf16.msra.mxu0 0
        %624 = vmatprep.subr.bf16.mxu0 0
        %625 = vmatpush1.bf16.msra.mxu0 0
        %626 = vmatprep.subr.bf16.mxu0 0
        %627 = vmatpush1.bf16.msra.mxu0 0
        %628 = vmatprep.subr.bf16.mxu0 %v618
        %629 = vmatpush1.bf16.msra.mxu0 %v615
        %630 = vmatprep.subr.bf16.mxu0 %v600
        %631 = vmatpush1.bf16.msra.mxu0 %v599
        %632 = vmatprep.subr.bf16.mxu0 %v598
        %633 = vmatpush1.bf16.msra.mxu0 %v597
        %634 = vmatprep.subr.bf16.mxu0 %v596
        %635 = vmatpush1.bf16.msra.mxu0 %v595
        %636 = vmatprep.subr.bf16.mxu0 0
        %637 = vmatpush2.bf16.msra.mxu0 0
        %638 = vmatprep.subr.bf16.mxu0 0
        %639 = vmatpush2.bf16.msra.mxu0 0
        %640 = vmatprep.subr.bf16.mxu0 0
        %641 = vmatpush2.bf16.msra.mxu0 0
        %642 = vmatprep.subr.bf16.mxu0 0
        %643 = vmatpush2.bf16.msra.mxu0 0
        %644 = vmatprep.subr.bf16.mxu0 0
        %645 = vmatpush2.bf16.msra.mxu0 0
        %646 = vmatprep.subr.bf16.mxu0 0
        %647 = vmatpush2.bf16.msra.mxu0 0
        %648 = vmatprep.subr.bf16.mxu0 0
        %649 = vmatpush2.bf16.msra.mxu0 0
        %650 = vmatprep.subr.bf16.mxu0 0
        %651 = vmatpush2.bf16.msra.mxu0 0
        %652 = vmatprep.mubr.bf16.mxu0 0
        %653 = vmatmul.mubr.bf16.gmra.mxu0 %v611
        %v654 = vpop.f32.mrf.mxu0
        %v655 = vadd.f32 0.0, %v654
        %v656 = vpop.f32.mrf.mxu0
        %v657 = vadd.f32 0.0, %v656
        %v658 = vpop.f32.mrf.mxu0
        %v659 = vadd.f32 0.0, %v658
        %v660 = vpop.f32.mrf.mxu0
        %v661 = vadd.f32 0.0, %v660
        %662 = vdwg.mxu0
        %v663 = vpack.c.bf16 %v659, %v655
        %v664 = vpack.c.bf16 %v661, %v657
        %v667 = vunpack.c.l.b16 %v663
        %v668 = vunpack.c.l.b16 %v664
        %v669 = vunpack.c.h.b16 %v663
        %v670 = vunpack.c.h.b16 %v664
        %v671 = vpack.c.b16 %v668, %v667
        %v672 = vpack.c.b16 %v670, %v669
        %675 = vst [vmem:[%s301] sm:$0xff] %v671
        %676 = vst [vmem:[%s301 + $0x8] sm:$0xff] %v672
      $region52: #{forward.1} parent=43 // pred_fallthru
        _
      %p677 = scmp.lt.s32.totalorder %s21, 1
      %s678 = scalar_select %p677, %s21, 1
      %s679 = smul.addr %s678, 4
      %s680 = smul.addr %s679, 4
      %s681 = scalar_lea.vmem %s6, %s680
      // Predicated region
      $region53: #{forward.1} parent=43 // pred_check
        %p682 = pneg %p185
      $region54: #{forward.1} parent=43 // pred_check_branch
        %684 = sbr.rel (%p682) target = $region56
      $region55: #{forward.1} parent=43 // pred_region
        _
      $region56: #{forward.1} parent=43 // pred_fallthru
        _
    $region44: #{forward.1} parent=5 // pred_fallthru
      _
    %p685 = scmp.le.s32.totalorder 2, %s12
    // Predicated region
    $region57: #{forward.1} parent=5 // pred_check
      %p686 = pneg %p685
    $region58: #{forward.1} parent=5 // pred_check_branch
      %688 = sbr.rel (%p686) target = $region60
    $region59: #{forward.1} parent=5 // pred_region
      %s689 = ssub.s32 %s12, 2
      // Predicated region
      $region61: #{forward.1} parent=59 // pred_check
        %p690 = pneg %p191
      $region62: #{forward.1} parent=59 // pred_check_branch
        %692 = sbr.rel (%p690) target = $region64
      $region63: #{forward.1} parent=59 // pred_region
        %p693 = scmp.lt.s32.totalorder %s23, 1
        %s694 = scalar_select %p693, %s23, 1
        %s695 = smul.addr %s694, 4
        %s696 = smul.addr %s695, 4
        %s697 = scalar_lea.vmem %s6, %s696
      $region64: #{forward.1} parent=59 // pred_fallthru
        _
    $region60: #{forward.1} parent=5 // pred_fallthru
      _
  $region6: #{forward.1} parent=0 // loop_footer
    %s16 = sadd.s32 1, %s12
  $region7: #{forward.1} parent=0 // loop_footer_branch
    %11 = sbr.rel target = $region3
  $region8: #{forward.1} parent=0 // loop_exit
    _

</llo_original>
